<compile_context>
chip_gen: v6e
topology: v6e:2x2x1
jax: 0.10.0
libtpu: 0.0.40
codegen_flags: <defaults>
</compile_context>

<pallas_src>
import functools
import numpy as np
import jax
import jax.numpy as jnp
from jax.experimental import pallas as pl
from jax.experimental.pallas import tpu as pltpu


# ----------------------------------------------------------------------------------
# Quantum-circuit parameter setup (plain numpy glue): build the effective observable M
# ----------------------------------------------------------------------------------
_H2 = (1.0 / np.sqrt(2.0)) * np.array([[1, 1], [1, -1]], dtype=np.complex128)
_X = np.array([[0, 1], [1, 0]], dtype=np.complex128)
_Y = np.array([[0, -1j], [1j, 0]], dtype=np.complex128)
_Z = np.array([[1, 0], [0, -1]], dtype=np.complex128)
_CNOT = np.array([[1, 0, 0, 0],
                  [0, 1, 0, 0],
                  [0, 0, 0, 1],
                  [0, 0, 1, 0]], dtype=np.complex128)
_CSWAP = np.eye(8, dtype=np.complex128)
_CSWAP[[5, 6], :] = _CSWAP[[6, 5], :]   # swap |101> <-> |110>  (control = first wire)


def _ry(theta):
    c, s = np.cos(theta / 2.0), np.sin(theta / 2.0)
    return np.array([[c, -s], [s, c]], dtype=np.complex128)


def _expand_op(op, wires, n):
    """Embed a 2^k x 2^k operator acting on `wires` (PennyLane order: wire 0 = MSB)
    into the full 2^n x 2^n space."""
    k = len(wires)
    rest = [w for w in range(n) if w not in wires]
    full = np.kron(op, np.eye(2 ** (n - k), dtype=np.complex128))
    full = full.reshape((2,) * (2 * n))
    order = list(wires) + rest
    perm = [order.index(q) for q in range(n)]
    full = np.transpose(full, perm + [n + p for p in perm])
    return full.reshape(2 ** n, 2 ** n)


def build_effective_observable(n_data_wires, n_discarded, weights_mps, p_noise=0.2):
    """Heisenberg-picture evolution of Z_anc through the noisy circuit.
    Returns the real Hermitian matrix M (D x D, D = 2^wires) such that the
    circuit expectation for a normalized data state psi is psi^T M psi."""
    W = n_data_wires
    dw = n_discarded
    n = W + dw + 1
    anc = W + dw

    ops = []  # ('U', full_matrix)  or  ('D', wire)

    def add_gate(mat, gwires):
        ops.append(('U', _expand_op(mat, gwires, n)))
        for w in gwires:                      # depolarizing noise after every gate
            ops.append(('D', w))

    add_gate(_H2, [anc])
    n_blocks = W - 1                          # qml.MPS with n_block_wires = 2
    for layer in range(weights_mps.shape[0]):
        for b in range(n_blocks):
            w0, w1 = dw + b, dw + b + 1
            add_gate(_ry(weights_mps[layer, b, 0]), [w0])
            add_gate(_ry(weights_mps[layer, b, 1]), [w1])
            add_gate(_CNOT, [w0, w1])
    for i in range(dw):
        add_gate(_CSWAP, [anc, i, i + dw])
    add_gate(_H2, [anc])

    Xs = {w: _expand_op(_X, [w], n) for w in range(n)}
    Ys = {w: _expand_op(_Y, [w], n) for w in range(n)}
    Zs = {w: _expand_op(_Z, [w], n) for w in range(n)}

    O = _expand_op(_Z, [anc], n)              # observable, evolved backwards
    for kind, val in reversed(ops):
        if kind == 'U':
            O = val.conj().T @ O @ val
        else:
            w = val
            O = (1.0 - p_noise) * O + (p_noise / 3.0) * (
                Xs[w] @ O @ Xs[w] + Ys[w] @ O @ Ys[w] + Zs[w] @ O @ Zs[w])

    D = 2 ** W
    idx = 2 * np.arange(D)                    # trash wires |0..0>, ancilla |0>
    M = O[np.ix_(idx, idx)]
    M = 0.5 * (M + M.conj().T)
    return np.real(M).astype(np.float32)


# ----------------------------------------------------------------------------------
# Pallas kernels
# ----------------------------------------------------------------------------------
def patch_expval_kernel(m00_ref, m_ref, pt_ref, out_ref, *, d_active):
    """Whole-batch per-patch expectation values <psi|M|psi> (psi = normalized patch).

    m00_ref : (1,)           SMEM -- <0|M|0>, value used for all-zero patches
    m_ref   : (Dpad, Dpad)   VMEM -- zero-padded effective observable
    pt_ref  : (Dpad, Npad)   VMEM -- patch vectors; D on sublanes, patches on lanes
    out_ref : (1, Npad)      VMEM -- lane-dense per-patch expectations
    """
    pt = pt_ref[...]                                   # (Dpad, Npad), full tiles
    # mv = M @ pt via d_active broadcast-FMAs on the whole (Dpad, Npad) array
    # (exact f32 on the VPU; avoids a tiny-K MXU pass and 1-sublane vreg ops).
    mv = m_ref[:, 0:1] * pt_ref[0:1, :]
    for j in range(1, d_active):
        mv = mv + m_ref[:, j:j + 1] * pt_ref[j:j + 1, :]

    q = jnp.sum(pt * mv, axis=0, keepdims=True)        # v^T M v  (XLU sublane reduce)
    nrm = jnp.sum(pt * pt, axis=0, keepdims=True)      # v^T v
    nonzero = nrm > 0.0
    # exact divide (negligible cost here; removes the approx-reciprocal ~1e-3 error)
    out_ref[...] = jnp.where(nonzero, q / jnp.where(nonzero, nrm, 1.0), m00_ref[0])


def overlap_add_kernel(vals_ref, e_ref, out_ref):
    """General-stride path only: out[b, :] = vals[b, :] @ E (1/count folded into E).

    vals_ref : (bs, Ppad)      VMEM  -- per-image patch expectations (zero padded)
    e_ref    : (Ppad, SSpad)   VMEM  -- de-kroned expansion matrix (lane-dense output)
    out_ref  : (bs, SSpad)     VMEM
    """
    out_ref[...] = jnp.dot(vals_ref[...], e_ref[...],
                           preferred_element_type=jnp.float32)


# ----------------------------------------------------------------------------------
# Wrapper glue
# ----------------------------------------------------------------------------------
def _round_up(n, m):
    return ((n + m - 1) // m) * m


def _cover_matrix(S, ppr, patch_no, K, stride):
    cover = np.zeros((patch_no, S, S), dtype=np.float32)
    for p in range(patch_no):
        r0 = (p // ppr) * stride
        c0 = (p % ppr) * stride
        cover[p, r0:r0 + K, c0:c0 + K] = 1.0
    return cover


def prepare_encoder_params(M_np, kernel_size, stride, image_size):
    """Host-side parameter setup -- call ONCE at init.  All device constants (padded M,
    <0|M|0>, and the de-kroned expansion matrix E for the overlapping-stride case) are
    built and uploaded here, not per forward call."""
    K = kernel_size
    D = int(M_np.shape[0])
    Dpad = max(8, _round_up(D, 8))
    S = image_size                                   # padding forced to 0 in __init__
    ppr = (S - K) // stride + 1
    patch_no = ppr * ppr

    Mp = np.zeros((Dpad, Dpad), dtype=np.float32)
    Mp[:D, :D] = M_np.astype(np.float32)

    params = dict(K=K, stride=stride, S=S, D=D, Dpad=Dpad, ppr=ppr, patch_no=patch_no,
                  M=jnp.asarray(Mp),
                  m00=jnp.asarray(M_np[0:1, 0].astype(np.float32)))

    blockwise = (stride == K and S % K == 0)
    params['blockwise'] = blockwise
    if not blockwise:
        # De-kroned expansion matrix: (patch_no, S*S), 1/count folded in, padded so the
        # matmul RHS/output are lane-dense.  O(patch_no * S*S), independent of batch.
        Ppad = max(128, _round_up(patch_no, 128))
        SSpad = max(128, _round_up(S * S, 128))
        cover = _cover_matrix(S, ppr, patch_no, K, stride)
        cnt = cover.sum(axis=0)
        # TODO(synk): pixels not covered by any patch are 0/0 (NaN) in the torch
        #             reference; here they are emitted as 0 (only stride > K configs).
        inv_cnt = np.where(cnt > 0, 1.0 / np.maximum(cnt, 1.0), 0.0).astype(np.float32)
        e = (cover * inv_cnt[None]).reshape(patch_no, S * S)
        Ep = np.zeros((Ppad, SSpad), dtype=np.float32)
        Ep[:patch_no, :S * S] = e
        params.update(E=jnp.asarray(Ep), Ppad=Ppad, SSpad=SSpad)
    return params


def _im2col_T(x, K, stride, ppr, Dpad, Npad):
    """Patch extraction of channel 0, torch-matching (row-major) patch order, emitted
    directly as the zero-padded (Dpad, Npad) kernel layout (D on sublanes, patches on
    lanes).  pad + transpose fused with the extraction."""
    bs, _, H, W = x.shape
    patch_no = ppr * ppr
    x0 = x[:, 0]
    if stride == K and H % K == 0 and W % K == 0:
        P = x0.reshape(bs, ppr, K, ppr, K)                           # [b, pr, i, pc, l]
        PT = jnp.transpose(P, (2, 4, 0, 1, 3)).reshape(K * K, bs * patch_no)
    else:
        r0 = np.arange(0, H - K + 1, stride)
        c0 = np.arange(0, W - K + 1, stride)
        ri = r0[:, None, None, None] + np.arange(K)[None, None, :, None]
        ci = c0[None, :, None, None] + np.arange(K)[None, None, None, :]
        P = x0[:, ri, ci]                                            # [b, pr, pc, i, l]
        PT = jnp.transpose(P, (3, 4, 0, 1, 2)).reshape(K * K, bs * patch_no)
    PT = jnp.pad(PT.astype(jnp.float32),
                 ((0, Dpad - K * K), (0, Npad - bs * patch_no)))
    return PT


def autoencoder_forward(x, enc):
    """x: (bs, ch, H, W) float32 NCHW; enc: output of prepare_encoder_params."""
    bs, _, H, W = x.shape
    K, stride, S = enc['K'], enc['stride'], enc['S']
    assert H == S and W == S, "image size must match the prepared parameters"
    Dpad, ppr, patch_no = enc['Dpad'], enc['ppr'], enc['patch_no']
    N = bs * patch_no
    Npad = max(128, _round_up(N, 128))           # fill lanes (batch folded into lanes)

    PT = _im2col_T(x, K, stride, ppr, Dpad, Npad)           # (Dpad, Npad)

    vals = pl.pallas_call(
        functools.partial(patch_expval_kernel, d_active=enc['D']),
        out_shape=jax.ShapeDtypeStruct((1, Npad), jnp.float32),
        in_specs=[
            pl.BlockSpec(memory_space=pltpu.MemorySpace.SMEM),   # m00 scalar
            pl.BlockSpec(memory_space=pltpu.MemorySpace.VMEM),   # M  (Dpad, Dpad)
            pl.BlockSpec(memory_space=pltpu.MemorySpace.VMEM),   # PT (Dpad, Npad)
        ],
        out_specs=pl.BlockSpec(memory_space=pltpu.MemorySpace.VMEM),
    )(enc['m00'], enc['M'], PT)

    if enc['blockwise']:
        # stride == kernel_size: each pixel covered by exactly one patch, count == 1.
        # Overlap-add degenerates to a KxK block broadcast -- pure layout plumbing.
        v = vals[0, :N].reshape(bs, ppr, ppr)
        out = jnp.broadcast_to(v[:, :, None, :, None],
                               (bs, ppr, K, ppr, K)).reshape(bs, S, S)
    else:
        # General (overlapping) stride: (bs, Ppad) x (Ppad, SSpad) matmul against the
        # de-kroned, count-normalized expansion matrix.
        Ppad, SSpad = enc['Ppad'], enc['SSpad']
        v = vals[0, :N].reshape(bs, patch_no)
        v = jnp.pad(v, ((0, 0), (0, Ppad - patch_no)))
        out_pix = pl.pallas_call(
            overlap_add_kernel,
            out_shape=jax.ShapeDtypeStruct((bs, SSpad), jnp.float32),
            in_specs=[
                pl.BlockSpec(memory_space=pltpu.MemorySpace.VMEM),
                pl.BlockSpec(memory_space=pltpu.MemorySpace.VMEM),
            ],
            out_specs=pl.BlockSpec(memory_space=pltpu.MemorySpace.VMEM),
        )(v, enc['E'])
        out = out_pix[:, :S * S].reshape(bs, S, S)
    return out


# ----------------------------------------------------------------------------------
# Pure numpy reference (float64): per-patch quadratic form + genuine overlap-add/count
# ----------------------------------------------------------------------------------
def reference_forward_np(x, M_np, K, stride):
    x_np = np.asarray(x, dtype=np.float64)
    bs, _, H, W = x_np.shape
    ppr = (H - K) // stride + 1
    patch_no = ppr * ppr
    D = M_np.shape[0]
    M64 = M_np.astype(np.float64)
    vals = np.zeros((bs, patch_no), dtype=np.float64)
    for b in range(bs):
        p = 0
        for r in range(0, H - K + 1, stride):
            for c in range(0, W - K + 1, stride):
                v = np.zeros(D, dtype=np.float64)
                v[:K * K] = x_np[b, 0, r:r + K, c:c + K].reshape(-1)
                n = v @ v
                vals[b, p] = (v @ M64 @ v) / n if n > 0 else M64[0, 0]
                p += 1
    mp = np.zeros((bs, H, W), dtype=np.float64)
    cnt = np.zeros((H, W), dtype=np.float64)
    for p in range(patch_no):
        r0 = (p // ppr) * stride
        c0 = (p % ppr) * stride
        mp[:, r0:r0 + K, c0:c0 + K] += vals[:, p][:, None, None]
        cnt[r0:r0 + K, c0:c0 + K] += 1.0
    return (mp / cnt).astype(np.float32)


if __name__ == "__main__":
    # params consistent with the module's __init__
    params = dict(kernel_size=2, stride=2, bottleneck_dim=1,
                  mps_layers=2, n_block_wires=2, n_params_block=2, seed=0)
    image_size = 8
    bs, ch = 2, 1

    kernel_size = params['kernel_size']
    stride = params['stride']
    wires = int(np.ceil(np.log2(kernel_size * kernel_size)))          # 2
    discarded_wires = wires - params['bottleneck_dim']                # 1
    n_blocks = wires - 1                                              # MPS, n_block_wires=2

    key = jax.random.PRNGKey(0)
    k_x, k_w = jax.random.split(key)
    x = jax.random.normal(k_x, (bs, ch, image_size, image_size), dtype=jnp.float32)
    weights_mps = np.asarray(
        jax.random.normal(k_w, (params['mps_layers'], n_blocks, params['n_params_block'])),
        dtype=np.float64)

    M_np = build_effective_observable(wires, discarded_wires, weights_mps, p_noise=0.2)

    # ---- configured path: stride == kernel_size (block-broadcast reconstruction) ----
    enc = prepare_encoder_params(M_np, kernel_size, stride, image_size)   # once, cached
    y = jax.block_until_ready(autoencoder_forward(x, enc))
    y_ref = reference_forward_np(x, M_np, kernel_size, stride)
    np.testing.assert_allclose(np.asarray(y), y_ref, rtol=1e-4, atol=5e-5)

    # ---- general path: overlapping patches (stride = 1) via de-kroned E matmul ----
    enc_ov = prepare_encoder_params(M_np, kernel_size, 1, image_size)
    y_ov = jax.block_until_ready(autoencoder_forward(x, enc_ov))
    y_ov_ref = reference_forward_np(x, M_np, kernel_size, 1)
    # looser tolerance: the overlap-add matmul runs on the MXU
    np.testing.assert_allclose(np.asarray(y_ov), y_ov_ref, rtol=2e-3, atol=2e-3)

    print("KERNEL_OK")
</pallas_src>

<mosaic_0001>
module attributes {stable_mosaic.version = 11 : i64} {
  func.func @patch_expval_kernel(%arg0: memref<1xf32, #tpu.memory_space<smem>>, %arg1: memref<8x8xf32, #tpu.memory_space<vmem>>, %arg2: memref<8x128xf32, #tpu.memory_space<vmem>>, %arg3: memref<1x128xf32, #tpu.memory_space<vmem>>) attributes {dimension_semantics = [], scalar_prefetch = 0 : i64, scratch_operands = 0 : i64, tpu.core_type = #tpu.core_type<tc>} {
    %c0 = arith.constant 0 : index
    %c0_0 = arith.constant 0 : index
    %0 = vector.load %arg2[%c0, %c0_0] : memref<8x128xf32, #tpu.memory_space<vmem>>, vector<8x128xf32>
    %c0_1 = arith.constant 0 : index
    %c0_2 = arith.constant 0 : index
    %1 = vector.load %arg1[%c0_1, %c0_2] : memref<8x8xf32, #tpu.memory_space<vmem>>, vector<8x1xf32>
    %c0_3 = arith.constant 0 : index
    %c0_4 = arith.constant 0 : index
    %2 = vector.load %arg2[%c0_3, %c0_4] : memref<8x128xf32, #tpu.memory_space<vmem>>, vector<1x128xf32>
    %3 = vector.broadcast %1 : vector<8x1xf32> to vector<8x128xf32>
    %4 = vector.broadcast %2 : vector<1x128xf32> to vector<8x128xf32>
    %5 = arith.mulf %3, %4 : vector<8x128xf32>
    %c0_5 = arith.constant 0 : index
    %c1 = arith.constant 1 : index
    %6 = vector.load %arg1[%c0_5, %c1] : memref<8x8xf32, #tpu.memory_space<vmem>>, vector<8x1xf32>
    %c1_6 = arith.constant 1 : index
    %c0_7 = arith.constant 0 : index
    %7 = vector.load %arg2[%c1_6, %c0_7] : memref<8x128xf32, #tpu.memory_space<vmem>>, vector<1x128xf32>
    %8 = vector.broadcast %6 : vector<8x1xf32> to vector<8x128xf32>
    %9 = vector.broadcast %7 : vector<1x128xf32> to vector<8x128xf32>
    %10 = arith.mulf %8, %9 : vector<8x128xf32>
    %11 = arith.addf %5, %10 : vector<8x128xf32>
    %c0_8 = arith.constant 0 : index
    %c2 = arith.constant 2 : index
    %12 = vector.load %arg1[%c0_8, %c2] : memref<8x8xf32, #tpu.memory_space<vmem>>, vector<8x1xf32>
    %c2_9 = arith.constant 2 : index
    %c0_10 = arith.constant 0 : index
    %13 = vector.load %arg2[%c2_9, %c0_10] : memref<8x128xf32, #tpu.memory_space<vmem>>, vector<1x128xf32>
    %14 = vector.broadcast %12 : vector<8x1xf32> to vector<8x128xf32>
    %15 = vector.broadcast %13 : vector<1x128xf32> to vector<8x128xf32>
    %16 = arith.mulf %14, %15 : vector<8x128xf32>
    %17 = arith.addf %11, %16 : vector<8x128xf32>
    %c0_11 = arith.constant 0 : index
    %c3 = arith.constant 3 : index
    %18 = vector.load %arg1[%c0_11, %c3] : memref<8x8xf32, #tpu.memory_space<vmem>>, vector<8x1xf32>
    %c3_12 = arith.constant 3 : index
    %c0_13 = arith.constant 0 : index
    %19 = vector.load %arg2[%c3_12, %c0_13] : memref<8x128xf32, #tpu.memory_space<vmem>>, vector<1x128xf32>
    %20 = vector.broadcast %18 : vector<8x1xf32> to vector<8x128xf32>
    %21 = vector.broadcast %19 : vector<1x128xf32> to vector<8x128xf32>
    %22 = arith.mulf %20, %21 : vector<8x128xf32>
    %23 = arith.addf %17, %22 : vector<8x128xf32>
    %24 = arith.mulf %0, %23 : vector<8x128xf32>
    %cst = arith.constant dense<0.000000e+00> : vector<128xf32>
    %25 = vector.multi_reduction <add>, %24, %cst [0] : vector<8x128xf32> to vector<128xf32>
    %26 = vector.shape_cast %25 : vector<128xf32> to vector<1x128xf32>
    %27 = arith.mulf %0, %0 : vector<8x128xf32>
    %cst_14 = arith.constant dense<0.000000e+00> : vector<128xf32>
    %28 = vector.multi_reduction <add>, %27, %cst_14 [0] : vector<8x128xf32> to vector<128xf32>
    %29 = vector.shape_cast %28 : vector<128xf32> to vector<1x128xf32>
    %cst_15 = arith.constant 0.000000e+00 : f32
    %30 = vector.broadcast %cst_15 : f32 to vector<1x128xf32>
    %31 = arith.cmpf ogt, %29, %30 : vector<1x128xf32>
    %cst_16 = arith.constant 1.000000e+00 : f32
    %32 = vector.broadcast %cst_16 : f32 to vector<1x128xf32>
    %33 = arith.select %31, %29, %32 : vector<1x128xi1>, vector<1x128xf32>
    %34 = arith.divf %26, %33 : vector<1x128xf32>
    %c0_17 = arith.constant 0 : index
    %35 = memref.load %arg0[%c0_17] : memref<1xf32, #tpu.memory_space<smem>>
    %36 = vector.broadcast %35 : f32 to vector<1x128xf32>
    %37 = arith.select %31, %34, %36 : vector<1x128xi1>, vector<1x128xf32>
    %c0_18 = arith.constant 0 : index
    %c0_19 = arith.constant 0 : index
    %38 = vector.load %arg3[%c0_18, %c0_19] : memref<1x128xf32, #tpu.memory_space<vmem>>, vector<1x128xf32>
    tpu.vector_store %arg3[%c0_18, %c0_19], %37 {strides = array<i32>} : memref<1x128xf32, #tpu.memory_space<vmem>>, vector<1x128xf32>,
    return
  }
}

</mosaic_0001>

<llo_original>
// kernel: tpu_custom_call.1
$region0: #{tpu_custom_call.1}
  #allocation0 [shape = 'u32[]', space=smem, size = 0x4, offset = 0x4, fixed_abs, tag = 'smem constant byte address 0x4 - core index']
  #allocation1 [shape = 'u32[144,128]{1,0:T(1,128)}', space=vmem, size = 0x12000, scoped, tag = 'internal scratch']
  #allocation2 [shape = 'f32[1]{0:T(128)S(6)}', space=smem, size = 0x200, scoped, tag = 'scoped memory for tpu_custom_call.1']
  %s0 = inlined_call_operand.<no memory space> [shape: f32[1], index: 0, kind: input, shape index: {}]
  %s1 = inlined_call_operand.hbm [shape: f32[8,8], index: 1, kind: input, shape index: {}]
  %s2 = inlined_call_operand.hbm [shape: f32[8,128], index: 2, kind: input, shape index: {}]
  %s3 = inlined_call_operand.hbm [shape: f32[1,128], index: 3, kind: output, shape index: {}]
  %s4 = sld [smem:[#allocation0]]
  $region30: #{tpu_custom_call.1} parent=0
    _
  %s6 = ssub.s32 1, %s4
  %s7 = scalar_select 0, %s6, %s4
  %8 = sst [smem:[#allocation2]] %s0
  $region1: #{tpu_custom_call.1} parent=0
    #allocation3 [shape = 'u8[4096]{0}', space=vmem, size = 0x1000, scoped, tag = 'input window, operand 1, single buffered']
    #allocation4 [shape = 's32[1]{0}', space=sflag, size = 0x4, scoped, tag = 'scoped memory for tpu_custom_call.1']
    #allocation5 [shape = 's32[1]{0}', space=sflag, size = 0x4, scoped, tag = 'scoped memory for tpu_custom_call.1']
    #allocation6 [shape = 'u8[4096]{0}', space=vmem, size = 0x1000, scoped, tag = 'input window, operand 2, single buffered']
    #allocation7 [shape = 's32[1]{0}', space=sflag, size = 0x4, scoped, tag = 'scoped memory for tpu_custom_call.1']
    #allocation8 [shape = 'u8[512]{0}', space=vmem, size = 0x400, scoped, tag = 'output window, operand 0, single buffered']
    %9 = vsyncpa [#allocation4], 0
    %10 = vsyncpa [#allocation7], 0
    %11 = vsyncpa [#allocation5], 0
    // Predicated region
    $region2: #{tpu_custom_call.1} parent=1 // pred_check
      _
    $region3: #{tpu_custom_call.1} parent=1 // pred_check_branch
      %13 = sbr.rel (0) target = $region5
    $region4: #{tpu_custom_call.1} parent=1 // pred_region
      _
    $region5: #{tpu_custom_call.1} parent=1 // pred_fallthru
      _
    // Predicated region
    $region6: #{tpu_custom_call.1} parent=1 // pred_check
      _
    $region7: #{tpu_custom_call.1} parent=1 // pred_check_branch
      %15 = sbr.rel (0) target = $region9
    $region8: #{tpu_custom_call.1} parent=1 // pred_region
      %s17 = ssub.s32 128, 128
      %18 = vsyncadd [#allocation4], %s17
      %s20 = sshll.u32 [#allocation3], 4
      %s21 = int_to_ptr.vmem [resolvable:$true] %s20
      %23 = dma.hbm_to_vmem [thread:$0]  %s1, 128, %s21, [#allocation4]
    $region9: #{tpu_custom_call.1} parent=1 // pred_fallthru
      _
    // Predicated region
    $region10: #{tpu_custom_call.1} parent=1 // pred_check
      _
    $region11: #{tpu_custom_call.1} parent=1 // pred_check_branch
      %25 = sbr.rel (0) target = $region13
    $region12: #{tpu_custom_call.1} parent=1 // pred_region
      %s27 = ssub.s32 128, 128
      %28 = vsyncadd [#allocation7], %s27
      %s30 = sshll.u32 [#allocation6], 4
      %s31 = int_to_ptr.vmem [resolvable:$true] %s30
      %33 = dma.hbm_to_vmem [thread:$0]  %s2, 128, %s31, [#allocation7]
    $region13: #{tpu_custom_call.1} parent=1 // pred_fallthru
      _
    // Predicated region
    $region14: #{tpu_custom_call.1} parent=1 // pred_check
      _
    $region15: #{tpu_custom_call.1} parent=1 // pred_check_branch
      %35 = sbr.rel (0) target = $region17
    $region16: #{tpu_custom_call.1} parent=1 // pred_region
      %36 = dma.done [#allocation4], 128
    $region17: #{tpu_custom_call.1} parent=1 // pred_fallthru
      _
    // Predicated region
    $region18: #{tpu_custom_call.1} parent=1 // pred_check
      _
    $region19: #{tpu_custom_call.1} parent=1 // pred_check_branch
      %38 = sbr.rel (0) target = $region21
    $region20: #{tpu_custom_call.1} parent=1 // pred_region
      %39 = dma.done [#allocation7], 128
    $region21: #{tpu_custom_call.1} parent=1 // pred_fallthru
      _
    %v40 = vld [vmem:[#allocation6] sm:$0xff]
    %v41 = vld [vmem:[#allocation3] sm:$0xff]
    %v42 = vld [vmem:[#allocation6] sm:$0x1]
    %44 = vset.pattern.permute.xlu0 0
    %45 = vperm.xlu0 %44, %v41
    %v46 = vpop.permute.xlu0 %45
    %v48 = vlaneseq
    %v49 = vshrl.u32 %v48, 7
    %v50 = vsub.s32 0, %v49
    %v51 = vrot.slane %v42, %v50
    %v52 = vmul.f32 %v46, %v51
    %v53 = vld [vmem:[#allocation6 + $0x1] sm:$0x1]
    %54 = vset.pattern.permute.xlu0 1
    %55 = vperm.xlu0 %54, %v41
    %v56 = vpop.permute.xlu0 %55
    %v58 = vlaneseq
    %v59 = vshrl.u32 %v58, 7
    %v60 = vsub.s32 0, %v59
    %v61 = vrot.slane %v53, %v60
    %v62 = vmul.f32 %v56, %v61
    %v63 = vadd.f32 %v52, %v62
    %v64 = vld [vmem:[#allocation6 + $0x2] sm:$0x1]
    %65 = vset.pattern.permute.xlu0 2
    %66 = vperm.xlu0 %65, %v41
    %v67 = vpop.permute.xlu0 %66
    %v69 = vlaneseq
    %v70 = vshrl.u32 %v69, 7
    %v71 = vsub.s32 0, %v70
    %v72 = vrot.slane %v64, %v71
    %v73 = vmul.f32 %v67, %v72
    %v74 = vadd.f32 %v63, %v73
    %v75 = vld [vmem:[#allocation6 + $0x3] sm:$0x1]
    %76 = vset.pattern.permute.xlu0 3
    %77 = vperm.xlu0 %76, %v41
    %v78 = vpop.permute.xlu0 %77
    %v80 = vlaneseq
    %v81 = vshrl.u32 %v80, 7
    %v82 = vsub.s32 0, %v81
    %v83 = vrot.slane %v75, %v82
    %v84 = vmul.f32 %v78, %v83
    %v85 = vadd.f32 %v74, %v84
    %v86 = vmul.f32 %v40, %v85
    %v87 = vrot.slane %v86, 4
    %v88 = vadd.f32 %v86, %v87
    %v89 = vrot.slane %v88, 2
    %v90 = vadd.f32 %v88, %v89
    %v91 = vrot.slane %v90, 1
    %v92 = vadd.f32 %v90, %v91
    %v93 = vmul.f32 %v40, %v40
    %v94 = vrot.slane %v93, 4
    %v95 = vadd.f32 %v93, %v94
    %v96 = vrot.slane %v95, 2
    %v97 = vadd.f32 %v95, %v96
    %v98 = vrot.slane %v97, 1
    %v99 = vadd.f32 %v97, %v98
    %vm100 = vcmp.gt.f32.partialorder %v99, 0.0
    %v101 = vsel %vm100, %v99, 1.0
    %v102 = vrcp.pop %v101
    %v103 = vmul.f32 %v92, %v102
    %s104 = sld [smem:[#allocation2]]
    %v105 = vstv %s104
    %v106 = vsel %vm100, %v103, %v105
    %107 = vst [vmem:[#allocation8] sm:$0x1] %v106
    // Predicated region
    $region22: #{tpu_custom_call.1} parent=1 // pred_check
      _
    $region23: #{tpu_custom_call.1} parent=1 // pred_check_branch
      %109 = sbr.rel (0) target = $region25
    $region24: #{tpu_custom_call.1} parent=1 // pred_region
      %s111 = ssub.s32 16, 16
      %112 = vsyncadd [#allocation5], %s111
      %s114 = sshll.u32 [#allocation8], 4
      %s115 = int_to_ptr.vmem [resolvable:$true] %s114
      %117 = dma.vmem_to_hbm [thread:$0]  %s115, 16, %s3, [#allocation5]
    $region25: #{tpu_custom_call.1} parent=1 // pred_fallthru
      _
    // Predicated region
    $region26: #{tpu_custom_call.1} parent=1 // pred_check
      _
    $region27: #{tpu_custom_call.1} parent=1 // pred_check_branch
      %119 = sbr.rel (0) target = $region29
    $region28: #{tpu_custom_call.1} parent=1 // pred_region
      %120 = dma.done [#allocation5], 16
    $region29: #{tpu_custom_call.1} parent=1 // pred_fallthru
      _
    %121 = vsyncpa [#allocation4], 1
    %122 = vsyncpa [#allocation7], 1
    %123 = vsyncpa [#allocation5], 1

</llo_original>
